<compile_context>
chip_gen: v6e
topology: v6e:2x2x1
jax: 0.10.0
libtpu: 0.0.40
codegen_flags: <defaults>
</compile_context>

<pallas_src>
import jax
import jax.numpy as jnp
from jax.experimental import pallas as pl
from jax.experimental.pallas import tpu as pltpu

NUM_CLASSES = 10
PADDED_CLASSES = 128  # lane-dense output block (classes live in lanes 0..9)


def _cdiv(a, b):
    return (a + b - 1) // b


def _round_up(n, m):
    return ((n + m - 1) // m) * m


def _mlp_kernel(x_ref, w1_ref, b1_ref, w2_ref, b2_ref, w3_ref, b3_ref, o_ref):
    # fc1 + relu : (TB, 784)bf16 @ (784, 100)bf16 -> fp32 accumulation on the MXU
    h = jnp.dot(x_ref[...], w1_ref[...], preferred_element_type=jnp.float32) + b1_ref[...]
    h = jnp.maximum(h, 0.0)
    # fc2 + relu : (TB, 100) @ (100, 52)
    h = jnp.dot(h.astype(jnp.bfloat16), w2_ref[...], preferred_element_type=jnp.float32) + b2_ref[...]
    h = jnp.maximum(h, 0.0)
    # fc3 (class-padded to 128 lanes): (TB, 52) @ (52, 128)
    logits = jnp.dot(h.astype(jnp.bfloat16), w3_ref[...], preferred_element_type=jnp.float32) + b3_ref[...]
    # Softmax over the class axis.  Padding lanes carry a -1e30 bias, so they never win
    # the max and their exp() underflows to exactly 0 -> denominator is unaffected.
    m = jnp.max(logits, axis=1, keepdims=True)
    e = jnp.exp(logits - m)
    denom = jnp.sum(e, axis=1, keepdims=True)
    inv = 1.0 / denom  # exact (one fp32 reciprocal per row); parity with reference softmax
    o_ref[...] = (e * inv).astype(o_ref.dtype)


def netv2_forward(x, params, *, tile_b=2048):
    """x: (B, 784), any float dtype (cast to bf16 for the HBM stream).
    params: dict of fp32 weights/biases (PyTorch layout transposed to (in, out)).
    Returns (B, 10) float32 softmax probabilities."""
    B, D = x.shape
    assert D == 784, f"expected 784 input features, got {D}"

    # Activations stream as bf16 (halves HBM traffic; MXU is bf16-native).
    # NOTE: in a real pipeline keep x bf16 end-to-end / fuse this cast into the producer
    # so the fp32 copy is never re-read from HBM.
    if x.dtype != jnp.bfloat16:
        x = x.astype(jnp.bfloat16)

    # Weights to bf16 once (tiny, ~0.2 MiB); biases stay fp32 for the fp32 epilogue adds.
    w1 = params["w1"].astype(jnp.bfloat16)
    w2 = params["w2"].astype(jnp.bfloat16)
    b1 = params["b1"].astype(jnp.float32)
    b2 = params["b2"].astype(jnp.float32)
    # fc3 padded to 128 classes: zero weight columns + -1e30 bias in padding lanes.
    w3p = jnp.zeros((52, PADDED_CLASSES), jnp.bfloat16).at[:, :NUM_CLASSES].set(
        params["w3"].astype(jnp.bfloat16))
    b3p = jnp.full((1, PADDED_CLASSES), -1e30, jnp.float32).at[:, :NUM_CLASSES].set(
        params["b3"].astype(jnp.float32))

    # Tile sizing: cap at tile_b rows, bound padding to <16 rows per tile, and use
    # >=2 grid steps when B >= 16 so the "parallel" batch axis can split across
    # v7x's two TensorCores (no-op on single-TC v5e/v6e).
    n_tiles = max(_cdiv(B, tile_b), 2 if B >= 16 else 1)
    tb = _round_up(_cdiv(B, n_tiles), 16)  # multiple of 16: bf16 sublane packing
    padded_b = tb * n_tiles
    if padded_b != B:
        # Zero-padded tail rows produce softmax(bias) garbage that is sliced off below.
        x = jnp.pad(x, ((0, padded_b - B), (0, 0)))

    out = pl.pallas_call(
        _mlp_kernel,
        out_shape=jax.ShapeDtypeStruct((padded_b, PADDED_CLASSES), jnp.float32),
        grid=(n_tiles,),
        in_specs=[
            # x: streamed per batch tile (double-buffered by the Pallas pipeline).
            pl.BlockSpec((tb, 784), lambda i: (i, 0)),
            # weights / biases: full blocks, constant index_map -> VMEM-resident.
            pl.BlockSpec(w1.shape, lambda i: (0, 0)),
            pl.BlockSpec(b1.shape, lambda i: (0, 0)),
            pl.BlockSpec(w2.shape, lambda i: (0, 0)),
            pl.BlockSpec(b2.shape, lambda i: (0, 0)),
            pl.BlockSpec(w3p.shape, lambda i: (0, 0)),
            pl.BlockSpec(b3p.shape, lambda i: (0, 0)),
        ],
        # Lane-dense (tb, 128) output block -> unmasked stores, dense HBM writeback.
        out_specs=pl.BlockSpec((tb, PADDED_CLASSES), lambda i: (i, 0)),
        compiler_params=pltpu.CompilerParams(
            dimension_semantics=("parallel",),   # megacore sharding on v7x
            vmem_limit_bytes=32 * 1024 * 1024,   # ~12 MiB used at TB=2048 bf16; headroom everywhere
        ),
    )(x, w1, b1, w2, b2, w3p, b3p)

    # Drop batch padding and the padded class lanes.
    return out[:B, :NUM_CLASSES]


def init_params(key):
    """Deterministic init mimicking PyTorch nn.Linear default (U[-1/sqrt(fan_in), ...])."""
    dims = [(784, 100), (100, 52), (52, 10)]
    params = {}
    keys = jax.random.split(key, 2 * len(dims))
    for i, (fan_in, fan_out) in enumerate(dims):
        bound = 1.0 / jnp.sqrt(float(fan_in))
        w = jax.random.uniform(keys[2 * i], (fan_in, fan_out), jnp.float32, -bound, bound)
        # biases kept 2-D (1, fan_out) for TPU-friendly layout; broadcast over batch.
        b = jax.random.uniform(keys[2 * i + 1], (1, fan_out), jnp.float32, -bound, bound)
        params[f"w{i + 1}"] = w
        params[f"b{i + 1}"] = b
    return params


def netv2_reference(x, params):
    h = jnp.maximum(x @ params["w1"] + params["b1"], 0.0)
    h = jnp.maximum(h @ params["w2"] + params["b2"], 0.0)
    logits = h @ params["w3"] + params["b3"]
    return jax.nn.softmax(logits, axis=1)


if __name__ == "__main__":
    key = jax.random.PRNGKey(0)
    k_x, k_p, k_x2 = jax.random.split(key, 3)
    params = init_params(k_p)

    # Small-shape check (single tile; B < 16 so grid=(1,)).
    B = 8
    x = jax.random.normal(k_x, (B, 784), jnp.float32)
    out = jax.block_until_ready(netv2_forward(x, params))
    ref = netv2_reference(x, params)
    assert out.shape == (B, NUM_CLASSES)
    # Exact normalization -> rows sum to 1 up to fp32 rounding.
    assert jnp.allclose(jnp.sum(out, axis=1), 1.0, atol=1e-3)
    # bf16 MXU operands (fp32 accumulation) -> slightly looser tolerances vs fp32 reference.
    assert jnp.allclose(out, ref, atol=2e-2, rtol=5e-2)

    # Multi-tile check with a ragged tail (exercises grid>=2 + right-sized-tile/pad path).
    B2 = 200
    x2 = jax.random.normal(k_x2, (B2, 784), jnp.float32)
    out2 = jax.block_until_ready(netv2_forward(x2, params, tile_b=64))
    ref2 = netv2_reference(x2, params)
    assert out2.shape == (B2, NUM_CLASSES)
    assert jnp.allclose(jnp.sum(out2, axis=1), 1.0, atol=1e-3)
    assert jnp.allclose(out2, ref2, atol=2e-2, rtol=5e-2)

    print("KERNEL_OK")
</pallas_src>

<mosaic_0001>
module attributes {stable_mosaic.version = 11 : i64} {
  func.func @_mlp_kernel(%arg0: i32, %arg1: memref<16x784xbf16, #tpu.memory_space<vmem>>, %arg2: memref<784x100xbf16, #tpu.memory_space<vmem>>, %arg3: memref<1x100xf32, #tpu.memory_space<vmem>>, %arg4: memref<100x52xbf16, #tpu.memory_space<vmem>>, %arg5: memref<1x52xf32, #tpu.memory_space<vmem>>, %arg6: memref<52x128xbf16, #tpu.memory_space<vmem>>, %arg7: memref<1x128xf32, #tpu.memory_space<vmem>>, %arg8: memref<16x128xf32, #tpu.memory_space<vmem>>) attributes {dimension_semantics = [#tpu.dimension_semantics<parallel>], iteration_bounds = array<i64: 1>, scalar_prefetch = 0 : i64, scratch_operands = 0 : i64, tpu.core_type = #tpu.core_type<tc>, window_params = [{transform_indices = @transform_0, window_bounds = array<i64: 16, 784>}, {pipeline_mode = #tpu.pipeline_mode<synchronous>, transform_indices = @transform_1, window_bounds = array<i64: 784, 100>}, {pipeline_mode = #tpu.pipeline_mode<synchronous>, transform_indices = @transform_2, window_bounds = array<i64: 1, 100>}, {pipeline_mode = #tpu.pipeline_mode<synchronous>, transform_indices = @transform_3, window_bounds = array<i64: 100, 52>}, {pipeline_mode = #tpu.pipeline_mode<synchronous>, transform_indices = @transform_4, window_bounds = array<i64: 1, 52>}, {pipeline_mode = #tpu.pipeline_mode<synchronous>, transform_indices = @transform_5, window_bounds = array<i64: 52, 128>}, {pipeline_mode = #tpu.pipeline_mode<synchronous>, transform_indices = @transform_6, window_bounds = array<i64: 1, 128>}, {transform_indices = @transform_7, window_bounds = array<i64: 16, 128>}]} {
    %c0 = arith.constant 0 : index
    %c0_0 = arith.constant 0 : index
    %0 = vector.load %arg1[%c0, %c0_0] : memref<16x784xbf16, #tpu.memory_space<vmem>>, vector<16x784xbf16>
    %c0_1 = arith.constant 0 : index
    %c0_2 = arith.constant 0 : index
    %1 = vector.load %arg2[%c0_1, %c0_2] : memref<784x100xbf16, #tpu.memory_space<vmem>>, vector<784x100xbf16>
    %cst = arith.constant dense<0.000000e+00> : vector<16x100xf32>
    %2 = tpu.matmul %0, %1, %cst {dimension_numbers = #tpu.dot_dimension_numbers<[1], [0], [0], [1], [0, 0, 1, 1], [], []>} : vector<16x784xbf16>, vector<784x100xbf16>, vector<16x100xf32> -> vector<16x100xf32>
    %c0_3 = arith.constant 0 : index
    %c0_4 = arith.constant 0 : index
    %3 = vector.load %arg3[%c0_3, %c0_4] : memref<1x100xf32, #tpu.memory_space<vmem>>, vector<1x100xf32>
    %4 = vector.broadcast %3 : vector<1x100xf32> to vector<16x100xf32>
    %5 = arith.addf %2, %4 : vector<16x100xf32>
    %cst_5 = arith.constant 0.000000e+00 : f32
    %6 = vector.broadcast %cst_5 : f32 to vector<16x100xf32>
    %7 = arith.maximumf %5, %6 : vector<16x100xf32>
    %8 = arith.truncf %7 : vector<16x100xf32> to vector<16x100xbf16>
    %c0_6 = arith.constant 0 : index
    %c0_7 = arith.constant 0 : index
    %9 = vector.load %arg4[%c0_6, %c0_7] : memref<100x52xbf16, #tpu.memory_space<vmem>>, vector<100x52xbf16>
    %cst_8 = arith.constant dense<0.000000e+00> : vector<16x52xf32>
    %10 = tpu.matmul %8, %9, %cst_8 {dimension_numbers = #tpu.dot_dimension_numbers<[1], [0], [0], [1], [0, 0, 1, 1], [], []>} : vector<16x100xbf16>, vector<100x52xbf16>, vector<16x52xf32> -> vector<16x52xf32>
    %c0_9 = arith.constant 0 : index
    %c0_10 = arith.constant 0 : index
    %11 = vector.load %arg5[%c0_9, %c0_10] : memref<1x52xf32, #tpu.memory_space<vmem>>, vector<1x52xf32>
    %12 = vector.broadcast %11 : vector<1x52xf32> to vector<16x52xf32>
    %13 = arith.addf %10, %12 : vector<16x52xf32>
    %cst_11 = arith.constant 0.000000e+00 : f32
    %14 = vector.broadcast %cst_11 : f32 to vector<16x52xf32>
    %15 = arith.maximumf %13, %14 : vector<16x52xf32>
    %16 = arith.truncf %15 : vector<16x52xf32> to vector<16x52xbf16>
    %c0_12 = arith.constant 0 : index
    %c0_13 = arith.constant 0 : index
    %17 = vector.load %arg6[%c0_12, %c0_13] : memref<52x128xbf16, #tpu.memory_space<vmem>>, vector<52x128xbf16>
    %cst_14 = arith.constant dense<0.000000e+00> : vector<16x128xf32>
    %18 = tpu.matmul %16, %17, %cst_14 {dimension_numbers = #tpu.dot_dimension_numbers<[1], [0], [0], [1], [0, 0, 1, 1], [], []>} : vector<16x52xbf16>, vector<52x128xbf16>, vector<16x128xf32> -> vector<16x128xf32>
    %c0_15 = arith.constant 0 : index
    %c0_16 = arith.constant 0 : index
    %19 = vector.load %arg7[%c0_15, %c0_16] : memref<1x128xf32, #tpu.memory_space<vmem>>, vector<1x128xf32>
    %20 = vector.broadcast %19 : vector<1x128xf32> to vector<16x128xf32>
    %21 = arith.addf %18, %20 : vector<16x128xf32>
    %cst_17 = arith.constant dense<0xFF800000> : vector<16xf32>
    %22 = vector.multi_reduction <maximumf>, %21, %cst_17 [1] : vector<16x128xf32> to vector<16xf32>
    %23 = vector.shape_cast %22 : vector<16xf32> to vector<16x1xf32>
    %24 = vector.broadcast %23 : vector<16x1xf32> to vector<16x128xf32>
    %25 = arith.subf %21, %24 : vector<16x128xf32>
    %26 = math.exp %25 : vector<16x128xf32>
    %cst_18 = arith.constant dense<0.000000e+00> : vector<16xf32>
    %27 = vector.multi_reduction <add>, %26, %cst_18 [1] : vector<16x128xf32> to vector<16xf32>
    %28 = vector.shape_cast %27 : vector<16xf32> to vector<16x1xf32>
    %cst_19 = arith.constant 1.000000e+00 : f32
    %29 = vector.broadcast %cst_19 : f32 to vector<16x1xf32>
    %30 = arith.divf %29, %28 : vector<16x1xf32>
    %31 = vector.broadcast %30 : vector<16x1xf32> to vector<16x128xf32>
    %32 = arith.mulf %26, %31 : vector<16x128xf32>
    %c0_20 = arith.constant 0 : index
    %c0_21 = arith.constant 0 : index
    %33 = vector.load %arg8[%c0_20, %c0_21] : memref<16x128xf32, #tpu.memory_space<vmem>>, vector<16x128xf32>
    tpu.vector_store %arg8[%c0_20, %c0_21], %32 {strides = array<i32>} : memref<16x128xf32, #tpu.memory_space<vmem>>, vector<16x128xf32>,
    return
  }
  func.func @transform_0(%arg0: i32) -> (i32, i32) {
    %c0_i32 = arith.constant 0 : i32
    %c0_i32_0 = arith.constant 0 : i32
    return %arg0, %c0_i32 : i32, i32
  }
  func.func @transform_1(%arg0: i32) -> (i32, i32) {
    %c0_i32 = arith.constant 0 : i32
    %c0_i32_0 = arith.constant 0 : i32
    %c0_i32_1 = arith.constant 0 : i32
    return %c0_i32, %c0_i32_0 : i32, i32
  }
  func.func @transform_2(%arg0: i32) -> (i32, i32) {
    %c0_i32 = arith.constant 0 : i32
    %c0_i32_0 = arith.constant 0 : i32
    %c0_i32_1 = arith.constant 0 : i32
    return %c0_i32, %c0_i32_0 : i32, i32
  }
  func.func @transform_3(%arg0: i32) -> (i32, i32) {
    %c0_i32 = arith.constant 0 : i32
    %c0_i32_0 = arith.constant 0 : i32
    %c0_i32_1 = arith.constant 0 : i32
    return %c0_i32, %c0_i32_0 : i32, i32
  }
  func.func @transform_4(%arg0: i32) -> (i32, i32) {
    %c0_i32 = arith.constant 0 : i32
    %c0_i32_0 = arith.constant 0 : i32
    %c0_i32_1 = arith.constant 0 : i32
    return %c0_i32, %c0_i32_0 : i32, i32
  }
  func.func @transform_5(%arg0: i32) -> (i32, i32) {
    %c0_i32 = arith.constant 0 : i32
    %c0_i32_0 = arith.constant 0 : i32
    %c0_i32_1 = arith.constant 0 : i32
    return %c0_i32, %c0_i32_0 : i32, i32
  }
  func.func @transform_6(%arg0: i32) -> (i32, i32) {
    %c0_i32 = arith.constant 0 : i32
    %c0_i32_0 = arith.constant 0 : i32
    %c0_i32_1 = arith.constant 0 : i32
    return %c0_i32, %c0_i32_0 : i32, i32
  }
  func.func @transform_7(%arg0: i32) -> (i32, i32) {
    %c0_i32 = arith.constant 0 : i32
    %c0_i32_0 = arith.constant 0 : i32
    return %arg0, %c0_i32 : i32, i32
  }
}

</mosaic_0001>

<llo_original>
// kernel: tpu_custom_call.1
$region0: #{tpu_custom_call.1}
  #allocation0 [shape = 'u32[]', space=smem, size = 0x4, offset = 0x4, fixed_abs, tag = 'smem constant byte address 0x4 - core index']
  #allocation1 [shape = 'u32[144,128]{1,0:T(1,128)}', space=vmem, size = 0x12000, scoped, tag = 'internal scratch']
  %s0 = inlined_call_operand.vmem [shape: bf16[16,784], index: 0, kind: input, shape index: {}]
  %s1 = inlined_call_operand.vmem [shape: bf16[784,100], index: 1, kind: input, shape index: {}]
  %s2 = inlined_call_operand.vmem [shape: f32[1,100], index: 2, kind: input, shape index: {}]
  %s3 = inlined_call_operand.vmem [shape: bf16[100,52], index: 3, kind: input, shape index: {}]
  %s4 = inlined_call_operand.vmem [shape: f32[1,52], index: 4, kind: input, shape index: {}]
  %s5 = inlined_call_operand.vmem [shape: bf16[52,128], index: 5, kind: input, shape index: {}]
  %s6 = inlined_call_operand.vmem [shape: f32[1,128], index: 6, kind: input, shape index: {}]
  %s7 = inlined_call_operand.hbm [shape: f32[16,128], index: 7, kind: output, shape index: {}]
  %s8 = sld [smem:[#allocation0]]
  $region38: #{tpu_custom_call.1} parent=0
    _
  %s10 = ssub.s32 1, %s8
  %s11 = scalar_select 0, %s10, %s8
  $region1: #{tpu_custom_call.1} parent=0
    #allocation2 [shape = 'u8[8192]{0}', space=vmem, size = 0x2000, scoped, tag = 'output window, operand 0, single buffered']
    #allocation3 [shape = 's32[1]{0}', space=sflag, size = 0x4, scoped, tag = 'scoped memory for tpu_custom_call.1']
    %12 = vsyncpa [#allocation3], 0
    // Predicated region
    $region2: #{tpu_custom_call.1} parent=1 // pred_check
      _
    $region3: #{tpu_custom_call.1} parent=1 // pred_check_branch
      %14 = sbr.rel (0) target = $region5
    $region4: #{tpu_custom_call.1} parent=1 // pred_region
      _
    $region5: #{tpu_custom_call.1} parent=1 // pred_fallthru
      _
    // Predicated region
    $region6: #{tpu_custom_call.1} parent=1 // pred_check
      _
    $region7: #{tpu_custom_call.1} parent=1 // pred_check_branch
      %16 = sbr.rel (0) target = $region9
    $region8: #{tpu_custom_call.1} parent=1 // pred_region
      _
    $region9: #{tpu_custom_call.1} parent=1 // pred_fallthru
      _
    // Predicated region
    $region10: #{tpu_custom_call.1} parent=1 // pred_check
      _
    $region11: #{tpu_custom_call.1} parent=1 // pred_check_branch
      %18 = sbr.rel (0) target = $region13
    $region12: #{tpu_custom_call.1} parent=1 // pred_region
      _
    $region13: #{tpu_custom_call.1} parent=1 // pred_fallthru
      _
    // Predicated region
    $region14: #{tpu_custom_call.1} parent=1 // pred_check
      _
    $region15: #{tpu_custom_call.1} parent=1 // pred_check_branch
      %20 = sbr.rel (0) target = $region17
    $region16: #{tpu_custom_call.1} parent=1 // pred_region
      _
    $region17: #{tpu_custom_call.1} parent=1 // pred_fallthru
      _
    // Predicated region
    $region18: #{tpu_custom_call.1} parent=1 // pred_check
      _
    $region19: #{tpu_custom_call.1} parent=1 // pred_check_branch
      %22 = sbr.rel (0) target = $region21
    $region20: #{tpu_custom_call.1} parent=1 // pred_region
      _
    $region21: #{tpu_custom_call.1} parent=1 // pred_fallthru
      _
    // Predicated region
    $region22: #{tpu_custom_call.1} parent=1 // pred_check
      _
    $region23: #{tpu_custom_call.1} parent=1 // pred_check_branch
      %24 = sbr.rel (0) target = $region25
    $region24: #{tpu_custom_call.1} parent=1 // pred_region
      _
    $region25: #{tpu_custom_call.1} parent=1 // pred_fallthru
      _
    // Predicated region
    $region26: #{tpu_custom_call.1} parent=1 // pred_check
      _
    $region27: #{tpu_custom_call.1} parent=1 // pred_check_branch
      %26 = sbr.rel (0) target = $region29
    $region28: #{tpu_custom_call.1} parent=1 // pred_region
      _
    $region29: #{tpu_custom_call.1} parent=1 // pred_fallthru
      _
    %v28 = vld [vmem:[%s0] sm:$0xff]
    %v29 = vld [vmem:[%s0 + $0x8] sm:$0xff]
    %v30 = vld [vmem:[%s0 + $0x10] sm:$0xff]
    %v31 = vld [vmem:[%s0 + $0x18] sm:$0xf]
    %v32 = vld [vmem:[%s0 + $0x1c] sm:$0xff]
    %v33 = vld [vmem:[%s0 + $0x24] sm:$0xff]
    %v34 = vld [vmem:[%s0 + $0x2c] sm:$0xff]
    %v35 = vld [vmem:[%s0 + $0x34] sm:$0xf]
    %v36 = vld [vmem:[%s1] sm:$0xf]
    %v37 = vld [vmem:[%s1 + $0x4] sm:$0xf]
    %v38 = vld [vmem:[%s1 + $0x8] sm:$0xf]
    %v39 = vld [vmem:[%s1 + $0xc] sm:$0xf]
    %v40 = vld [vmem:[%s1 + $0x10] sm:$0xf]
    %v41 = vld [vmem:[%s1 + $0x14] sm:$0xf]
    %v42 = vld [vmem:[%s1 + $0x18] sm:$0xf]
    %v43 = vld [vmem:[%s1 + $0x1c] sm:$0xf]
    %v44 = vld [vmem:[%s1 + $0x20] sm:$0xf]
    %v45 = vld [vmem:[%s1 + $0x24] sm:$0xf]
    %v46 = vld [vmem:[%s1 + $0x28] sm:$0xf]
    %v47 = vld [vmem:[%s1 + $0x2c] sm:$0xf]
    %v48 = vld [vmem:[%s1 + $0x30] sm:$0xf]
    %v49 = vld [vmem:[%s1 + $0x34] sm:$0xf]
    %v50 = vld [vmem:[%s1 + $0x38] sm:$0xf]
    %v51 = vld [vmem:[%s1 + $0x3c] sm:$0xf]
    %v52 = vld [vmem:[%s1 + $0x40] sm:$0xf]
    %v53 = vld [vmem:[%s1 + $0x44] sm:$0xf]
    %v54 = vld [vmem:[%s1 + $0x48] sm:$0xf]
    %v55 = vld [vmem:[%s1 + $0x4c] sm:$0xf]
    %v56 = vld [vmem:[%s1 + $0x50] sm:$0xf]
    %v57 = vld [vmem:[%s1 + $0x54] sm:$0xf]
    %v58 = vld [vmem:[%s1 + $0x58] sm:$0xf]
    %v59 = vld [vmem:[%s1 + $0x5c] sm:$0xf]
    %v60 = vld [vmem:[%s1 + $0x60] sm:$0xf]
    %v61 = vld [vmem:[%s1 + $0x64] sm:$0xf]
    %v62 = vld [vmem:[%s1 + $0x68] sm:$0xf]
    %v63 = vld [vmem:[%s1 + $0x6c] sm:$0xf]
    %v64 = vld [vmem:[%s1 + $0x70] sm:$0xf]
    %v65 = vld [vmem:[%s1 + $0x74] sm:$0xf]
    %v66 = vld [vmem:[%s1 + $0x78] sm:$0xf]
    %v67 = vld [vmem:[%s1 + $0x7c] sm:$0xf]
    %v68 = vld [vmem:[%s1 + $0x80] sm:$0xf]
    %v69 = vld [vmem:[%s1 + $0x84] sm:$0xf]
    %v70 = vld [vmem:[%s1 + $0x88] sm:$0xf]
    %v71 = vld [vmem:[%s1 + $0x8c] sm:$0xf]
    %v72 = vld [vmem:[%s1 + $0x90] sm:$0xf]
    %v73 = vld [vmem:[%s1 + $0x94] sm:$0xf]
    %v74 = vld [vmem:[%s1 + $0x98] sm:$0xf]
    %v75 = vld [vmem:[%s1 + $0x9c] sm:$0xf]
    %v76 = vld [vmem:[%s1 + $0xa0] sm:$0xf]
    %v77 = vld [vmem:[%s1 + $0xa4] sm:$0xf]
    %v78 = vld [vmem:[%s1 + $0xa8] sm:$0xf]
    %v79 = vld [vmem:[%s1 + $0xac] sm:$0xf]
    %v80 = vld [vmem:[%s1 + $0xb0] sm:$0xf]
    %v81 = vld [vmem:[%s1 + $0xb4] sm:$0xf]
    %v82 = vld [vmem:[%s1 + $0xb8] sm:$0xf]
    %v83 = vld [vmem:[%s1 + $0xbc] sm:$0xf]
    %v84 = vld [vmem:[%s1 + $0xc0] sm:$0xf]
    %v85 = vld [vmem:[%s1 + $0xc4] sm:$0xf]
    %v86 = vld [vmem:[%s1 + $0xc8] sm:$0xf]
    %v87 = vld [vmem:[%s1 + $0xcc] sm:$0xf]
    %v88 = vld [vmem:[%s1 + $0xd0] sm:$0xf]
    %v89 = vld [vmem:[%s1 + $0xd4] sm:$0xf]
    %v90 = vld [vmem:[%s1 + $0xd8] sm:$0xf]
    %v91 = vld [vmem:[%s1 + $0xdc] sm:$0xf]
    %v92 = vld [vmem:[%s1 + $0xe0] sm:$0xf]
    %v93 = vld [vmem:[%s1 + $0xe4] sm:$0xf]
    %v94 = vld [vmem:[%s1 + $0xe8] sm:$0xf]
    %v95 = vld [vmem:[%s1 + $0xec] sm:$0xf]
    %v96 = vld [vmem:[%s1 + $0xf0] sm:$0xf]
    %v97 = vld [vmem:[%s1 + $0xf4] sm:$0xf]
    %v98 = vld [vmem:[%s1 + $0xf8] sm:$0xf]
    %v99 = vld [vmem:[%s1 + $0xfc] sm:$0xf]
    %v100 = vld [vmem:[%s1 + $0x100] sm:$0xf]
    %v101 = vld [vmem:[%s1 + $0x104] sm:$0xf]
    %v102 = vld [vmem:[%s1 + $0x108] sm:$0xf]
    %v103 = vld [vmem:[%s1 + $0x10c] sm:$0xf]
    %v104 = vld [vmem:[%s1 + $0x110] sm:$0xf]
    %v105 = vld [vmem:[%s1 + $0x114] sm:$0xf]
    %v106 = vld [vmem:[%s1 + $0x118] sm:$0xf]
    %v107 = vld [vmem:[%s1 + $0x11c] sm:$0xf]
    %v108 = vld [vmem:[%s1 + $0x120] sm:$0xf]
    %v109 = vld [vmem:[%s1 + $0x124] sm:$0xf]
    %v110 = vld [vmem:[%s1 + $0x128] sm:$0xf]
    %v111 = vld [vmem:[%s1 + $0x12c] sm:$0xf]
    %v112 = vld [vmem:[%s1 + $0x130] sm:$0xf]
    %v113 = vld [vmem:[%s1 + $0x134] sm:$0xf]
    %v114 = vld [vmem:[%s1 + $0x138] sm:$0xf]
    %v115 = vld [vmem:[%s1 + $0x13c] sm:$0xf]
    %v116 = vld [vmem:[%s1 + $0x140] sm:$0xf]
    %v117 = vld [vmem:[%s1 + $0x144] sm:$0xf]
    %v118 = vld [vmem:[%s1 + $0x148] sm:$0xf]
    %v119 = vld [vmem:[%s1 + $0x14c] sm:$0xf]
    %v120 = vld [vmem:[%s1 + $0x150] sm:$0xf]
    %v121 = vld [vmem:[%s1 + $0x154] sm:$0xf]
    %v122 = vld [vmem:[%s1 + $0x158] sm:$0xf]
    %v123 = vld [vmem:[%s1 + $0x15c] sm:$0xf]
    %v124 = vld [vmem:[%s1 + $0x160] sm:$0xf]
    %v125 = vld [vmem:[%s1 + $0x164] sm:$0xf]
    %v126 = vld [vmem:[%s1 + $0x168] sm:$0xf]
    %v127 = vld [vmem:[%s1 + $0x16c] sm:$0xf]
    %v128 = vld [vmem:[%s1 + $0x170] sm:$0xf]
    %v129 = vld [vmem:[%s1 + $0x174] sm:$0xf]
    %v130 = vld [vmem:[%s1 + $0x178] sm:$0xf]
    %v131 = vld [vmem:[%s1 + $0x17c] sm:$0xf]
    %v132 = vld [vmem:[%s1 + $0x180] sm:$0xf]
    %v133 = vld [vmem:[%s1 + $0x184] sm:$0xf]
    %v134 = vld [vmem:[%s2] sm:$0x1]
    %v136 = vlaneseq
    %v137 = vshrl.u32 %v136, 7
    %v138 = vsub.s32 0, %v137
    %v139 = vrot.slane %v134, %v138
    %v149 = vunpack.c.l.b16 %v28
    %v150 = vunpack.c.h.b16 %v28
    %v151 = vunpack.c.l.b16 %v29
    %v152 = vunpack.c.h.b16 %v29
    %v153 = vunpack.c.l.b16 %v30
    %v154 = vunpack.c.h.b16 %v30
    %v155 = vunpack.c.l.b16 %v31
    %v156 = vunpack.c.l.b16 %v32
    %v157 = vunpack.c.h.b16 %v32
    %v158 = vunpack.c.l.b16 %v33
    %v159 = vunpack.c.h.b16 %v33
    %v160 = vunpack.c.l.b16 %v34
    %v161 = vunpack.c.h.b16 %v34
    %v162 = vunpack.c.l.b16 %v35
    %v163 = vpack.c.b16 %v156, %v149
    %v164 = vpack.c.b16 %v157, %v150
    %v165 = vpack.c.b16 %v158, %v151
    %v166 = vpack.c.b16 %v159, %v152
    %v167 = vpack.c.b16 %v160, %v153
    %v168 = vpack.c.b16 %v161, %v154
    %v169 = vpack.c.b16 %v162, %v155
    %v274 = vunpack.c.l.b16 %v36
    %v275 = vunpack.c.l.b16 %v37
    %v276 = vunpack.c.l.b16 %v38
    %v277 = vunpack.c.l.b16 %v39
    %v278 = vunpack.c.l.b16 %v40
    %v279 = vunpack.c.l.b16 %v41
    %v280 = vunpack.c.l.b16 %v42
    %v281 = vunpack.c.l.b16 %v43
    %v282 = vunpack.c.l.b16 %v44
    %v283 = vunpack.c.l.b16 %v45
    %v284 = vunpack.c.l.b16 %v46
    %v285 = vunpack.c.l.b16 %v47
    %v286 = vunpack.c.l.b16 %v48
    %v287 = vunpack.c.l.b16 %v49
    %v288 = vunpack.c.l.b16 %v50
    %v289 = vunpack.c.l.b16 %v51
    %v290 = vunpack.c.l.b16 %v52
    %v291 = vunpack.c.l.b16 %v53
    %v292 = vunpack.c.l.b16 %v54
    %v293 = vunpack.c.l.b16 %v55
    %v294 = vunpack.c.l.b16 %v56
    %v295 = vunpack.c.l.b16 %v57
    %v296 = vunpack.c.l.b16 %v58
    %v297 = vunpack.c.l.b16 %v59
    %v298 = vunpack.c.l.b16 %v60
    %v299 = vunpack.c.l.b16 %v61
    %v300 = vunpack.c.l.b16 %v62
    %v301 = vunpack.c.l.b16 %v63
    %v302 = vunpack.c.l.b16 %v64
    %v303 = vunpack.c.l.b16 %v65
    %v304 = vunpack.c.l.b16 %v66
    %v305 = vunpack.c.l.b16 %v67
    %v306 = vunpack.c.l.b16 %v68
    %v307 = vunpack.c.l.b16 %v69
    %v308 = vunpack.c.l.b16 %v70
    %v309 = vunpack.c.l.b16 %v71
    %v310 = vunpack.c.l.b16 %v72
    %v311 = vunpack.c.l.b16 %v73
    %v312 = vunpack.c.l.b16 %v74
    %v313 = vunpack.c.l.b16 %v75
    %v314 = vunpack.c.l.b16 %v76
    %v315 = vunpack.c.l.b16 %v77
    %v316 = vunpack.c.l.b16 %v78
    %v317 = vunpack.c.l.b16 %v79
    %v318 = vunpack.c.l.b16 %v80
    %v319 = vunpack.c.l.b16 %v81
    %v320 = vunpack.c.l.b16 %v82
    %v321 = vunpack.c.l.b16 %v83
    %v322 = vunpack.c.l.b16 %v84
    %v323 = vunpack.c.l.b16 %v85
    %v324 = vunpack.c.l.b16 %v86
    %v325 = vunpack.c.l.b16 %v87
    %v326 = vunpack.c.l.b16 %v88
    %v327 = vunpack.c.l.b16 %v89
    %v328 = vunpack.c.l.b16 %v90
    %v329 = vunpack.c.l.b16 %v91
    %v330 = vunpack.c.l.b16 %v92
    %v331 = vunpack.c.l.b16 %v93
    %v332 = vunpack.c.l.b16 %v94
    %v333 = vunpack.c.l.b16 %v95
    %v334 = vunpack.c.l.b16 %v96
    %v335 = vunpack.c.l.b16 %v97
    %v336 = vunpack.c.l.b16 %v98
    %v337 = vunpack.c.l.b16 %v99
    %v338 = vunpack.c.l.b16 %v100
    %v339 = vunpack.c.l.b16 %v101
    %v340 = vunpack.c.l.b16 %v102
    %v341 = vunpack.c.l.b16 %v103
    %v342 = vunpack.c.l.b16 %v104
    %v343 = vunpack.c.l.b16 %v105
    %v344 = vunpack.c.l.b16 %v106
    %v345 = vunpack.c.l.b16 %v107
    %v346 = vunpack.c.l.b16 %v108
    %v347 = vunpack.c.l.b16 %v109
    %v348 = vunpack.c.l.b16 %v110
    %v349 = vunpack.c.l.b16 %v111
    %v350 = vunpack.c.l.b16 %v112
    %v351 = vunpack.c.l.b16 %v113
    %v352 = vunpack.c.l.b16 %v114
    %v353 = vunpack.c.l.b16 %v115
    %v354 = vunpack.c.l.b16 %v116
    %v355 = vunpack.c.l.b16 %v117
    %v356 = vunpack.c.l.b16 %v118
    %v357 = vunpack.c.l.b16 %v119
    %v358 = vunpack.c.l.b16 %v120
    %v359 = vunpack.c.l.b16 %v121
    %v360 = vunpack.c.l.b16 %v122
    %v361 = vunpack.c.l.b16 %v123
    %v362 = vunpack.c.l.b16 %v124
    %v363 = vunpack.c.l.b16 %v125
    %v364 = vunpack.c.l.b16 %v126
    %v365 = vunpack.c.l.b16 %v127
    %v366 = vunpack.c.l.b16 %v128
    %v367 = vunpack.c.l.b16 %v129
    %v368 = vunpack.c.l.b16 %v130
    %v369 = vunpack.c.l.b16 %v131
    %v370 = vunpack.c.l.b16 %v132
    %v371 = vunpack.c.l.b16 %v133
    %v372 = vpack.c.b16 %v275, %v274
    %v373 = vpack.c.b16 %v277, %v276
    %v374 = vpack.c.b16 %v279, %v278
    %v375 = vpack.c.b16 %v281, %v280
    %v376 = vpack.c.b16 %v283, %v282
    %v377 = vpack.c.b16 %v285, %v284
    %v378 = vpack.c.b16 %v287, %v286
    %v379 = vpack.c.b16 %v289, %v288
    %v380 = vpack.c.b16 %v291, %v290
    %v381 = vpack.c.b16 %v293, %v292
    %v382 = vpack.c.b16 %v295, %v294
    %v383 = vpack.c.b16 %v297, %v296
    %v384 = vpack.c.b16 %v299, %v298
    %v385 = vpack.c.b16 %v301, %v300
    %v386 = vpack.c.b16 %v303, %v302
    %v387 = vpack.c.b16 %v305, %v304
    %v388 = vpack.c.b16 %v307, %v306
    %v389 = vpack.c.b16 %v309, %v308
    %v390 = vpack.c.b16 %v311, %v310
    %v391 = vpack.c.b16 %v313, %v312
    %v392 = vpack.c.b16 %v315, %v314
    %v393 = vpack.c.b16 %v317, %v316
    %v394 = vpack.c.b16 %v319, %v318
    %v395 = vpack.c.b16 %v321, %v320
    %v396 = vpack.c.b16 %v323, %v322
    %v397 = vpack.c.b16 %v325, %v324
    %v398 = vpack.c.b16 %v327, %v326
    %v399 = vpack.c.b16 %v329, %v328
    %v400 = vpack.c.b16 %v331, %v330
    %v401 = vpack.c.b16 %v333, %v332
    %v402 = vpack.c.b16 %v335, %v334
    %v403 = vpack.c.b16 %v337, %v336
    %v404 = vpack.c.b16 %v339, %v338
    %v405 = vpack.c.b16 %v341, %v340
    %v406 = vpack.c.b16 %v343, %v342
    %v407 = vpack.c.b16 %v345, %v344
    %v408 = vpack.c.b16 %v347, %v346
    %v409 = vpack.c.b16 %v349, %v348
    %v410 = vpack.c.b16 %v351, %v350
    %v411 = vpack.c.b16 %v353, %v352
    %v412 = vpack.c.b16 %v355, %v354
    %v413 = vpack.c.b16 %v357, %v356
    %v414 = vpack.c.b16 %v359, %v358
    %v415 = vpack.c.b16 %v361, %v360
    %v416 = vpack.c.b16 %v363, %v362
    %v417 = vpack.c.b16 %v365, %v364
    %v418 = vpack.c.b16 %v367, %v366
    %v419 = vpack.c.b16 %v369, %v368
    %v420 = vpack.c.b16 %v371, %v370
    %vm470 = vcmask 130048
    %v472 = vsel %vm470, %v169, 0
    %474 = vmatprep.subr.bf16.mxu0 0
    %475 = vmatpush1.bf16.msra.mxu0 %v379
    %476 = vmatprep.subr.bf16.mxu0 0
    %477 = vmatpush1.bf16.msra.mxu0 %v378
    %478 = vmatprep.subr.bf16.mxu0 0
    %479 = vmatpush1.bf16.msra.mxu0 %v377
    %480 = vmatprep.subr.bf16.mxu0 0
    %481 = vmatpush1.bf16.msra.mxu0 %v376
    %482 = vmatprep.subr.bf16.mxu0 0
    %483 = vmatpush1.bf16.msra.mxu0 %v375
    %484 = vmatprep.subr.bf16.mxu0 0
    %485 = vmatpush1.bf16.msra.mxu0 %v374
    %486 = vmatprep.subr.bf16.mxu0 0
    %487 = vmatpush1.bf16.msra.mxu0 %v373
    %488 = vmatprep.subr.bf16.mxu0 0
    %489 = vmatpush1.bf16.msra.mxu0 %v372
    %490 = vmatprep.subr.bf16.mxu0 0
    %491 = vmatpush2.bf16.msra.mxu0 %v387
    %492 = vmatprep.subr.bf16.mxu0 0
    %493 = vmatpush2.bf16.msra.mxu0 %v386
    %494 = vmatprep.subr.bf16.mxu0 0
    %495 = vmatpush2.bf16.msra.mxu0 %v385
    %496 = vmatprep.subr.bf16.mxu0 0
    %497 = vmatpush2.bf16.msra.mxu0 %v384
    %498 = vmatprep.subr.bf16.mxu0 0
    %499 = vmatpush2.bf16.msra.mxu0 %v383
    %500 = vmatprep.subr.bf16.mxu0 0
    %501 = vmatpush2.bf16.msra.mxu0 %v382
    %502 = vmatprep.subr.bf16.mxu0 0
    %503 = vmatpush2.bf16.msra.mxu0 %v381
    %504 = vmatprep.subr.bf16.mxu0 0
    %505 = vmatpush2.bf16.msra.mxu0 %v380
    %506 = vmatprep.mubr.bf16.mxu0 %v164
    %507 = vmatmul.mubr.bf16.gmra.mxu0 %v163
    %v508 = vpop.f32.mrf.mxu0
    %v509 = vadd.f32 %v139, %v508
    %v510 = vpop.f32.mrf.mxu0
    %v511 = vpop.f32.mrf.mxu0
    %v512 = vadd.f32 %v139, %v511
    %v513 = vpop.f32.mrf.mxu0
    %514 = vdwg.mxu0
    %515 = vmatprep.subr.bf16.mxu0 0
    %516 = vmatpush1.bf16.msra.mxu0 %v395
    %517 = vmatprep.subr.bf16.mxu0 0
    %518 = vmatpush1.bf16.msra.mxu0 %v394
    %519 = vmatprep.subr.bf16.mxu0 0
    %520 = vmatpush1.bf16.msra.mxu0 %v393
    %521 = vmatprep.subr.bf16.mxu0 0
    %522 = vmatpush1.bf16.msra.mxu0 %v392
    %523 = vmatprep.subr.bf16.mxu0 0
    %524 = vmatpush1.bf16.msra.mxu0 %v391
    %525 = vmatprep.subr.bf16.mxu0 0
    %526 = vmatpush1.bf16.msra.mxu0 %v390
    %527 = vmatprep.subr.bf16.mxu0 0
    %528 = vmatpush1.bf16.msra.mxu0 %v389
    %529 = vmatprep.subr.bf16.mxu0 0
    %530 = vmatpush1.bf16.msra.mxu0 %v388
    %531 = vmatprep.subr.bf16.mxu0 0
    %532 = vmatpush2.bf16.msra.mxu0 %v403
    %533 = vmatprep.subr.bf16.mxu0 0
    %534 = vmatpush2.bf16.msra.mxu0 %v402
    %535 = vmatprep.subr.bf16.mxu0 0
    %536 = vmatpush2.bf16.msra.mxu0 %v401
    %537 = vmatprep.subr.bf16.mxu0 0
    %538 = vmatpush2.bf16.msra.mxu0 %v400
    %539 = vmatprep.subr.bf16.mxu0 0
    %540 = vmatpush2.bf16.msra.mxu0 %v399
    %541 = vmatprep.subr.bf16.mxu0 0
    %542 = vmatpush2.bf16.msra.mxu0 %v398
    %543 = vmatprep.subr.bf16.mxu0 0
    %544 = vmatpush2.bf16.msra.mxu0 %v397
    %545 = vmatprep.subr.bf16.mxu0 0
    %546 = vmatpush2.bf16.msra.mxu0 %v396
    %547 = vmatprep.mubr.bf16.mxu0 %v166
    %548 = vmatmul.mubr.bf16.gmra.mxu0 %v165
    %v549 = vpop.f32.mrf.mxu0
    %v550 = vadd.f32 %v509, %v549
    %v551 = vpop.f32.mrf.mxu0
    %v552 = vpop.f32.mrf.mxu0
    %v553 = vadd.f32 %v512, %v552
    %v554 = vpop.f32.mrf.mxu0
    %555 = vdwg.mxu0
    %556 = vmatprep.subr.bf16.mxu0 0
    %557 = vmatpush1.bf16.msra.mxu0 %v411
    %558 = vmatprep.subr.bf16.mxu0 0
    %559 = vmatpush1.bf16.msra.mxu0 %v410
    %560 = vmatprep.subr.bf16.mxu0 0
    %561 = vmatpush1.bf16.msra.mxu0 %v409
    %562 = vmatprep.subr.bf16.mxu0 0
    %563 = vmatpush1.bf16.msra.mxu0 %v408
    %564 = vmatprep.subr.bf16.mxu0 0
    %565 = vmatpush1.bf16.msra.mxu0 %v407
    %566 = vmatprep.subr.bf16.mxu0 0
    %567 = vmatpush1.bf16.msra.mxu0 %v406
    %568 = vmatprep.subr.bf16.mxu0 0
    %569 = vmatpush1.bf16.msra.mxu0 %v405
    %570 = vmatprep.subr.bf16.mxu0 0
    %571 = vmatpush1.bf16.msra.mxu0 %v404
    %572 = vmatprep.subr.bf16.mxu0 0
    %573 = vmatpush2.bf16.msra.mxu0 %v419
    %574 = vmatprep.subr.bf16.mxu0 0
    %575 = vmatpush2.bf16.msra.mxu0 %v418
    %576 = vmatprep.subr.bf16.mxu0 0
    %577 = vmatpush2.bf16.msra.mxu0 %v417
    %578 = vmatprep.subr.bf16.mxu0 0
    %579 = vmatpush2.bf16.msra.mxu0 %v416
    %580 = vmatprep.subr.bf16.mxu0 0
    %581 = vmatpush2.bf16.msra.mxu0 %v415
    %582 = vmatprep.subr.bf16.mxu0 0
    %583 = vmatpush2.bf16.msra.mxu0 %v414
    %584 = vmatprep.subr.bf16.mxu0 0
    %585 = vmatpush2.bf16.msra.mxu0 %v413
    %586 = vmatprep.subr.bf16.mxu0 0
    %587 = vmatpush2.bf16.msra.mxu0 %v412
    %588 = vmatprep.mubr.bf16.mxu0 %v168
    %589 = vmatmul.mubr.bf16.gmra.mxu0 %v167
    %v590 = vpop.f32.mrf.mxu0
    %v591 = vadd.f32 %v550, %v590
    %v592 = vpop.f32.mrf.mxu0
    %v593 = vpop.f32.mrf.mxu0
    %v594 = vadd.f32 %v553, %v593
    %v595 = vpop.f32.mrf.mxu0
    %596 = vdwg.mxu0
    %597 = vmatprep.subr.bf16.mxu0 0
    %598 = vmatpush1.bf16.msra.mxu0 0
    %599 = vmatprep.subr.bf16.mxu0 0
    %600 = vmatpush1.bf16.msra.mxu0 0
    %601 = vmatprep.subr.bf16.mxu0 0
    %602 = vmatpush1.bf16.msra.mxu0 0
    %603 = vmatprep.subr.bf16.mxu0 0
    %604 = vmatpush1.bf16.msra.mxu0 0
    %605 = vmatprep.subr.bf16.mxu0 0
    %606 = vmatpush1.bf16.msra.mxu0 0
    %607 = vmatprep.subr.bf16.mxu0 0
    %608 = vmatpush1.bf16.msra.mxu0 0
    %609 = vmatprep.subr.bf16.mxu0 0
    %610 = vmatpush1.bf16.msra.mxu0 0
    %611 = vmatprep.subr.bf16.mxu0 0
    %612 = vmatpush1.bf16.msra.mxu0 %v420
    %613 = vmatprep.subr.bf16.mxu0 0
    %614 = vmatpush2.bf16.msra.mxu0 0
    %615 = vmatprep.subr.bf16.mxu0 0
    %616 = vmatpush2.bf16.msra.mxu0 0
    %617 = vmatprep.subr.bf16.mxu0 0
    %618 = vmatpush2.bf16.msra.mxu0 0
    %619 = vmatprep.subr.bf16.mxu0 0
    %620 = vmatpush2.bf16.msra.mxu0 0
    %621 = vmatprep.subr.bf16.mxu0 0
    %622 = vmatpush2.bf16.msra.mxu0 0
    %623 = vmatprep.subr.bf16.mxu0 0
    %624 = vmatpush2.bf16.msra.mxu0 0
    %625 = vmatprep.subr.bf16.mxu0 0
    %626 = vmatpush2.bf16.msra.mxu0 0
    %627 = vmatprep.subr.bf16.mxu0 0
    %628 = vmatpush2.bf16.msra.mxu0 0
    %629 = vmatprep.mubr.bf16.mxu0 0
    %630 = vmatmul.mubr.bf16.gmra.mxu0 %v472
    %v631 = vpop.f32.mrf.mxu0
    %v632 = vadd.f32 %v591, %v631
    %v633 = vpop.f32.mrf.mxu0
    %v634 = vpop.f32.mrf.mxu0
    %v635 = vadd.f32 %v594, %v634
    %v636 = vpop.f32.mrf.mxu0
    %637 = vdwg.mxu0
    %v638 = vmax.f32 %v632, 0.0
    %v639 = vmax.f32 %v635, 0.0
    %v640 = vpack.c.bf16 %v639, %v638
    %v641 = vld [vmem:[%s3] sm:$0xf]
    %v642 = vld [vmem:[%s3 + $0x4] sm:$0xf]
    %v643 = vld [vmem:[%s3 + $0x8] sm:$0xf]
    %v644 = vld [vmem:[%s3 + $0xc] sm:$0xf]
    %v645 = vld [vmem:[%s3 + $0x10] sm:$0xf]
    %v646 = vld [vmem:[%s3 + $0x14] sm:$0xf]
    %v647 = vld [vmem:[%s3 + $0x18] sm:$0xf]
    %v648 = vld [vmem:[%s3 + $0x1c] sm:$0xf]
    %v649 = vld [vmem:[%s3 + $0x20] sm:$0xf]
    %v650 = vld [vmem:[%s3 + $0x24] sm:$0xf]
    %v651 = vld [vmem:[%s3 + $0x28] sm:$0xf]
    %v652 = vld [vmem:[%s3 + $0x2c] sm:$0xf]
    %v653 = vld [vmem:[%s3 + $0x30] sm:$0x3]
    %v654 = vld [vmem:[%s4] sm:$0x1]
    %v656 = vlaneseq
    %v657 = vshrl.u32 %v656, 7
    %v658 = vsub.s32 0, %v657
    %v659 = vrot.slane %v654, %v658
    %v674 = vunpack.c.l.b16 %v641
    %v675 = vunpack.c.l.b16 %v642
    %v676 = vunpack.c.l.b16 %v643
    %v677 = vunpack.c.l.b16 %v644
    %v678 = vunpack.c.l.b16 %v645
    %v679 = vunpack.c.l.b16 %v646
    %v680 = vunpack.c.l.b16 %v647
    %v681 = vunpack.c.l.b16 %v648
    %v682 = vunpack.c.l.b16 %v649
    %v683 = vunpack.c.l.b16 %v650
    %v684 = vunpack.c.l.b16 %v651
    %v685 = vunpack.c.l.b16 %v652
    %v686 = vunpack.c.l.b16 %v653
    %v687 = vpack.c.b16 %v675, %v674
    %v688 = vpack.c.b16 %v677, %v676
    %v689 = vpack.c.b16 %v679, %v678
    %v690 = vpack.c.b16 %v681, %v680
    %v691 = vpack.c.b16 %v683, %v682
    %v692 = vpack.c.b16 %v685, %v684
    %v693 = vpack.c.b16 %v686, %v686
    %vm700 = vcmask 818176
    %v702 = vsel %vm700, %v640, 0
    %vm704 = vcmask 1041408
    %v706 = vsel %vm704, %v693, 0
    %708 = vmatprep.subr.bf16.mxu0 0
    %709 = vmatpush1.bf16.msra.mxu0 0
    %710 = vmatprep.subr.bf16.mxu0 0
    %711 = vmatpush1.bf16.msra.mxu0 %v706
    %712 = vmatprep.subr.bf16.mxu0 0
    %713 = vmatpush1.bf16.msra.mxu0 %v692
    %714 = vmatprep.subr.bf16.mxu0 0
    %715 = vmatpush1.bf16.msra.mxu0 %v691
    %716 = vmatprep.subr.bf16.mxu0 0
    %717 = vmatpush1.bf16.msra.mxu0 %v690
    %718 = vmatprep.subr.bf16.mxu0 0
    %719 = vmatpush1.bf16.msra.mxu0 %v689
    %720 = vmatprep.subr.bf16.mxu0 0
    %721 = vmatpush1.bf16.msra.mxu0 %v688
    %722 = vmatprep.subr.bf16.mxu0 0
    %723 = vmatpush1.bf16.msra.mxu0 %v687
    %724 = vmatprep.subr.bf16.mxu0 0
    %725 = vmatpush2.bf16.msra.mxu0 0
    %726 = vmatprep.subr.bf16.mxu0 0
    %727 = vmatpush2.bf16.msra.mxu0 0
    %728 = vmatprep.subr.bf16.mxu0 0
    %729 = vmatpush2.bf16.msra.mxu0 0
    %730 = vmatprep.subr.bf16.mxu0 0
    %731 = vmatpush2.bf16.msra.mxu0 0
    %732 = vmatprep.subr.bf16.mxu0 0
    %733 = vmatpush2.bf16.msra.mxu0 0
    %734 = vmatprep.subr.bf16.mxu0 0
    %735 = vmatpush2.bf16.msra.mxu0 0
    %736 = vmatprep.subr.bf16.mxu0 0
    %737 = vmatpush2.bf16.msra.mxu0 0
    %738 = vmatprep.subr.bf16.mxu0 0
    %739 = vmatpush2.bf16.msra.mxu0 0
    %740 = vmatprep.mubr.bf16.mxu0 0
    %741 = vmatmul.mubr.bf16.gmra.mxu0 %v702
    %v742 = vpop.f32.mrf.mxu0
    %v743 = vadd.f32 %v659, %v742
    %v744 = vpop.f32.mrf.mxu0
    %v745 = vpop.f32.mrf.mxu0
    %v746 = vadd.f32 %v659, %v745
    %v747 = vpop.f32.mrf.mxu0
    %748 = vdwg.mxu0
    %v749 = vmax.f32 %v743, 0.0
    %v750 = vmax.f32 %v746, 0.0
    %v751 = vpack.c.bf16 %v750, %v749
    %v752 = vld [vmem:[%s5] sm:$0xf]
    %v753 = vld [vmem:[%s5 + $0x4] sm:$0xf]
    %v754 = vld [vmem:[%s5 + $0x8] sm:$0xf]
    %v755 = vld [vmem:[%s5 + $0xc] sm:$0xf]
    %v756 = vld [vmem:[%s5 + $0x10] sm:$0xf]
    %v757 = vld [vmem:[%s5 + $0x14] sm:$0xf]
    %v758 = vld [vmem:[%s5 + $0x18] sm:$0x3]
    %v759 = vld [vmem:[%s6] sm:$0x1]
    %v761 = vlaneseq
    %v762 = vshrl.u32 %v761, 7
    %v763 = vsub.s32 0, %v762
    %v764 = vrot.slane %v759, %v763
    %v773 = vunpack.c.l.b16 %v752
    %v774 = vunpack.c.l.b16 %v753
    %v775 = vunpack.c.l.b16 %v754
    %v776 = vunpack.c.l.b16 %v755
    %v777 = vunpack.c.l.b16 %v756
    %v778 = vunpack.c.l.b16 %v757
    %v779 = vunpack.c.l.b16 %v758
    %v780 = vpack.c.b16 %v774, %v773
    %v781 = vpack.c.b16 %v776, %v775
    %v782 = vpack.c.b16 %v778, %v777
    %v783 = vpack.c.b16 %v779, %v779
    %vm787 = vcmask 424960
    %v789 = vsel %vm787, %v751, 0
    %v792 = vsel %vm704, %v783, 0
    %794 = vmatprep.subr.bf16.mxu0 0
    %795 = vmatpush1.bf16.msra.mxu0 0
    %796 = vmatprep.subr.bf16.mxu0 0
    %797 = vmatpush1.bf16.msra.mxu0 0
    %798 = vmatprep.subr.bf16.mxu0 0
    %799 = vmatpush1.bf16.msra.mxu0 0
    %800 = vmatprep.subr.bf16.mxu0 0
    %801 = vmatpush1.bf16.msra.mxu0 0
    %802 = vmatprep.subr.bf16.mxu0 0
    %803 = vmatpush1.bf16.msra.mxu0 %v792
    %804 = vmatprep.subr.bf16.mxu0 0
    %805 = vmatpush1.bf16.msra.mxu0 %v782
    %806 = vmatprep.subr.bf16.mxu0 0
    %807 = vmatpush1.bf16.msra.mxu0 %v781
    %808 = vmatprep.subr.bf16.mxu0 0
    %809 = vmatpush1.bf16.msra.mxu0 %v780
    %810 = vmatprep.subr.bf16.mxu0 0
    %811 = vmatpush2.bf16.msra.mxu0 0
    %812 = vmatprep.subr.bf16.mxu0 0
    %813 = vmatpush2.bf16.msra.mxu0 0
    %814 = vmatprep.subr.bf16.mxu0 0
    %815 = vmatpush2.bf16.msra.mxu0 0
    %816 = vmatprep.subr.bf16.mxu0 0
    %817 = vmatpush2.bf16.msra.mxu0 0
    %818 = vmatprep.subr.bf16.mxu0 0
    %819 = vmatpush2.bf16.msra.mxu0 0
    %820 = vmatprep.subr.bf16.mxu0 0
    %821 = vmatpush2.bf16.msra.mxu0 0
    %822 = vmatprep.subr.bf16.mxu0 0
    %823 = vmatpush2.bf16.msra.mxu0 0
    %824 = vmatprep.subr.bf16.mxu0 0
    %825 = vmatpush2.bf16.msra.mxu0 0
    %826 = vmatprep.mubr.bf16.mxu0 0
    %827 = vmatmul.mubr.bf16.gmra.mxu0 %v789
    %v828 = vpop.f32.mrf.mxu0
    %v829 = vadd.f32 %v764, %v828
    %v830 = vpop.f32.mrf.mxu0
    %v831 = vpop.f32.mrf.mxu0
    %v832 = vadd.f32 %v764, %v831
    %v833 = vpop.f32.mrf.mxu0
    %834 = vdwg.mxu0
    %835 = vmax.xlane.f32.xlu0 %v829
    %v836 = vpop.xlane.xlu0 %835
    %837 = vmax.xlane.f32.xlu0 %v832
    %v838 = vpop.xlane.xlu0 %837
    %v839 = vsub.f32 %v829, %v836
    %v840 = vsub.f32 %v832, %v838
    %v841 = vmul.f32 %v839, 1.442695
    %v842 = vpow.pop %v841
    %v843 = vmul.f32 %v840, 1.442695
    %v844 = vpow.pop %v843
    %845 = vadd.xlane.f32.xlu0 %v842
    %v846 = vpop.xlane.xlu0 %845
    %847 = vadd.xlane.f32.xlu0 %v844
    %v848 = vpop.xlane.xlu0 %847
    %v849 = vrcp.pop %v846
    %v850 = vmul.f32 1.0, %v849
    %v851 = vrcp.pop %v848
    %v852 = vmul.f32 1.0, %v851
    %v853 = vmul.f32 %v842, %v850
    %v854 = vmul.f32 %v844, %v852
    %855 = vst [vmem:[#allocation2] sm:$0xff] %v853
    %856 = vst [vmem:[#allocation2 + $0x8] sm:$0xff] %v854
    // Predicated region
    $region30: #{tpu_custom_call.1} parent=1 // pred_check
      _
    $region31: #{tpu_custom_call.1} parent=1 // pred_check_branch
      %858 = sbr.rel (0) target = $region33
    $region32: #{tpu_custom_call.1} parent=1 // pred_region
      %s860 = ssub.s32 256, 256
      %861 = vsyncadd [#allocation3], %s860
      %s862 = sshll.u32 [#allocation2], 4
      %s863 = int_to_ptr.vmem [resolvable:$true] %s862
      %868 = dma.vmem_to_hbm [thread:$0]  %s863, 256, %s7, [#allocation3], 128, 128, 8
    $region33: #{tpu_custom_call.1} parent=1 // pred_fallthru
      _
    // Predicated region
    $region34: #{tpu_custom_call.1} parent=1 // pred_check
      _
    $region35: #{tpu_custom_call.1} parent=1 // pred_check_branch
      %870 = sbr.rel (0) target = $region37
    $region36: #{tpu_custom_call.1} parent=1 // pred_region
      %871 = dma.done [#allocation3], 256
    $region37: #{tpu_custom_call.1} parent=1 // pred_fallthru
      _
    %872 = vsyncpa [#allocation3], 1

</llo_original>
